<compile_context>
chip_gen: v6e
topology: v6e:2x2x1
jax: 0.10.0
libtpu: 0.0.40
codegen_flags: <defaults>
</compile_context>

<pallas_src>
import jax
import jax.numpy as jnp
from jax import lax
from jax.experimental import pallas as pl
from jax.experimental.pallas import tpu as pltpu

_EPS = 1e-12            # matches torch.nn.functional.normalize default eps
_EPS2 = _EPS * _EPS     # max(sqrt(s), eps) == sqrt(max(s, eps^2)); fine in f32
_LANE = 128
_SUBLANE = 8
_R_TILE_MAX = 512       # 512 sublanes * 128 lanes = 65,536 rotations per step


def _cdiv(a, b):
    return -(-a // b)


def _round_up(a, b):
    return _cdiv(a, b) * b


def _rot6d_kernel(x_ref, o_ref):
    # x_ref: (6, r_tile, 128) -- each 6D-repr component is a dense
    # sublane+lane tile, so every intermediate below is full vregs.
    f32 = jnp.float32
    a1x = x_ref[0].astype(f32)
    a2x = x_ref[1].astype(f32)
    a1y = x_ref[2].astype(f32)
    a2y = x_ref[3].astype(f32)
    a1z = x_ref[4].astype(f32)
    a2z = x_ref[5].astype(f32)

    # b1 = normalize(a1):  1/max(||a1||, eps) == rsqrt(max(||a1||^2, eps^2))
    inv1 = lax.rsqrt(jnp.maximum(a1x * a1x + a1y * a1y + a1z * a1z, _EPS2))
    b1x, b1y, b1z = a1x * inv1, a1y * inv1, a1z * inv1

    # u = a2 - <b1, a2> b1 ;  b2 = normalize(u)
    dot = b1x * a2x + b1y * a2y + b1z * a2z
    ux, uy, uz = a2x - dot * b1x, a2y - dot * b1y, a2z - dot * b1z
    inv2 = lax.rsqrt(jnp.maximum(ux * ux + uy * uy + uz * uz, _EPS2))
    b2x, b2y, b2z = ux * inv2, uy * inv2, uz * inv2

    # b3 = cross(b1, b2)
    b3x = b1y * b2z - b1z * b2y
    b3y = b1z * b2x - b1x * b2z
    b3z = b1x * b2y - b1y * b2x

    # output row k = 3*i + j  <=>  out[n, i, j]   (stack([b1, b2, b3], dim=-1))
    odt = o_ref.dtype
    o_ref[0] = b1x.astype(odt)
    o_ref[1] = b2x.astype(odt)
    o_ref[2] = b3x.astype(odt)
    o_ref[3] = b1y.astype(odt)
    o_ref[4] = b2y.astype(odt)
    o_ref[5] = b3y.astype(odt)
    o_ref[6] = b1z.astype(odt)
    o_ref[7] = b2z.astype(odt)
    o_ref[8] = b3z.astype(odt)


def continuous_rot_repr_decode(module_input, *, r_tile_max=_R_TILE_MAX):
    """Pallas equivalent of ContinousRotReprDecoder.forward.

    Accepts any array whose total size is a multiple of 6 (same as
    torch .view(-1, 3, 2)); returns an (N, 3, 3) array of rotation matrices.
    On v7x, r_tile_max may be raised to 1024-2048 (VMEM limit below already
    leaves headroom); 512 is safe on all generations.
    """
    x = jnp.asarray(module_input).reshape(-1, 6)
    n = x.shape[0]
    dtype = x.dtype
    itemsize = jnp.dtype(dtype).itemsize

    # --- pick the tiling ---------------------------------------------------
    # rows of 128 rotations each; rows is a multiple of the sublane tile (8).
    rows_needed = max(_SUBLANE, _round_up(_cdiv(n, _LANE), _SUBLANE))
    if rows_needed <= _SUBLANE:
        n_steps, r_tile = 1, rows_needed
    else:
        # >= 2 grid steps so the "parallel" axis feeds both v7x TensorCores;
        # cap the per-step tile at r_tile_max sublane rows.
        n_steps = max(2, _cdiv(rows_needed, r_tile_max))
        r_tile = _round_up(_cdiv(rows_needed, n_steps), _SUBLANE)
    rows = n_steps * r_tile
    n_pad = rows * _LANE

    # --- host-side layout: (N, 6) -> (6, rows, 128) SoA slab ----------------
    # Padding rows are zeros: the eps^2 clamp keeps them finite; dropped below.
    xp = x if n_pad == n else jnp.pad(x, ((0, n_pad - n), (0, 0)))
    xk = xp.reshape(rows, _LANE, 6).transpose(2, 0, 1)        # (6, rows, 128)

    # Per-step VMEM: (6+9) * r_tile * 128 * itemsize, double buffered.
    bytes_per_step = 15 * r_tile * _LANE * itemsize
    vmem_limit = min(max(32 * 1024 * 1024, 2 * bytes_per_step + (4 << 20)),
                     96 * 1024 * 1024)

    out9 = pl.pallas_call(
        _rot6d_kernel,
        out_shape=jax.ShapeDtypeStruct((9, rows, _LANE), dtype),
        grid=(n_steps,),
        in_specs=[pl.BlockSpec((6, r_tile, _LANE), lambda i: (0, i, 0))],
        out_specs=pl.BlockSpec((9, r_tile, _LANE), lambda i: (0, i, 0)),
        compiler_params=pltpu.CompilerParams(
            dimension_semantics=("parallel",),
            vmem_limit_bytes=vmem_limit),
        cost_estimate=pl.CostEstimate(
            flops=40 * n_pad,
            transcendentals=2 * n_pad,
            bytes_accessed=15 * n_pad * itemsize),
    )(xk)

    # (9, rows, 128) -> (3, 3, n_pad) -> (n_pad, 3, 3) -> drop padding.
    return out9.reshape(3, 3, n_pad).transpose(2, 0, 1)[:n]


def _reference(module_input):
    """Pure-JAX reference mirroring the PyTorch forward exactly."""
    r = jnp.asarray(module_input).reshape(-1, 3, 2)
    a1, a2 = r[:, :, 0], r[:, :, 1]
    b1 = a1 / jnp.maximum(jnp.linalg.norm(a1, axis=1, keepdims=True), _EPS)
    dot = jnp.sum(b1 * a2, axis=1, keepdims=True)
    u = a2 - dot * b1
    b2 = u / jnp.maximum(jnp.linalg.norm(u, axis=-1, keepdims=True), _EPS)
    b3 = jnp.cross(b1, b2, axis=1)
    return jnp.stack([b1, b2, b3], axis=-1)


if __name__ == "__main__":
    key = jax.random.PRNGKey(0)
    # e.g. a batch of 2 with 4 joints, each parameterized by a 6D rotation repr.
    module_input = jax.random.normal(key, (2, 4, 6), dtype=jnp.float32)

    out = continuous_rot_repr_decode(module_input)
    out = jax.block_until_ready(out)

    ref = _reference(module_input)
    assert out.shape == (8, 3, 3), out.shape
    assert jnp.allclose(out, ref, atol=1e-5, rtol=1e-5), float(
        jnp.max(jnp.abs(out - ref)))

    print("KERNEL_OK")
</pallas_src>

<mosaic_0001>
module attributes {stable_mosaic.version = 11 : i64} {
  func.func @_rot6d_kernel(%arg0: i32, %arg1: memref<6x8x128xf32, #tpu.memory_space<vmem>>, %arg2: memref<9x8x128xf32, #tpu.memory_space<vmem>>) attributes {dimension_semantics = [#tpu.dimension_semantics<parallel>], iteration_bounds = array<i64: 1>, scalar_prefetch = 0 : i64, scratch_operands = 0 : i64, tpu.core_type = #tpu.core_type<tc>, window_params = [{transform_indices = @transform_0, window_bounds = array<i64: 6, 8, 128>}, {transform_indices = @transform_1, window_bounds = array<i64: 9, 8, 128>}]} {
    %c0 = arith.constant 0 : index
    %c0_0 = arith.constant 0 : index
    %c0_1 = arith.constant 0 : index
    %0 = vector.load %arg1[%c0, %c0_0, %c0_1] : memref<6x8x128xf32, #tpu.memory_space<vmem>>, vector<1x8x128xf32>
    %1 = vector.shape_cast %0 : vector<1x8x128xf32> to vector<8x128xf32>
    %c1 = arith.constant 1 : index
    %c0_2 = arith.constant 0 : index
    %c0_3 = arith.constant 0 : index
    %2 = vector.load %arg1[%c1, %c0_2, %c0_3] : memref<6x8x128xf32, #tpu.memory_space<vmem>>, vector<1x8x128xf32>
    %3 = vector.shape_cast %2 : vector<1x8x128xf32> to vector<8x128xf32>
    %c2 = arith.constant 2 : index
    %c0_4 = arith.constant 0 : index
    %c0_5 = arith.constant 0 : index
    %4 = vector.load %arg1[%c2, %c0_4, %c0_5] : memref<6x8x128xf32, #tpu.memory_space<vmem>>, vector<1x8x128xf32>
    %5 = vector.shape_cast %4 : vector<1x8x128xf32> to vector<8x128xf32>
    %c3 = arith.constant 3 : index
    %c0_6 = arith.constant 0 : index
    %c0_7 = arith.constant 0 : index
    %6 = vector.load %arg1[%c3, %c0_6, %c0_7] : memref<6x8x128xf32, #tpu.memory_space<vmem>>, vector<1x8x128xf32>
    %7 = vector.shape_cast %6 : vector<1x8x128xf32> to vector<8x128xf32>
    %c4 = arith.constant 4 : index
    %c0_8 = arith.constant 0 : index
    %c0_9 = arith.constant 0 : index
    %8 = vector.load %arg1[%c4, %c0_8, %c0_9] : memref<6x8x128xf32, #tpu.memory_space<vmem>>, vector<1x8x128xf32>
    %9 = vector.shape_cast %8 : vector<1x8x128xf32> to vector<8x128xf32>
    %c5 = arith.constant 5 : index
    %c0_10 = arith.constant 0 : index
    %c0_11 = arith.constant 0 : index
    %10 = vector.load %arg1[%c5, %c0_10, %c0_11] : memref<6x8x128xf32, #tpu.memory_space<vmem>>, vector<1x8x128xf32>
    %11 = vector.shape_cast %10 : vector<1x8x128xf32> to vector<8x128xf32>
    %12 = arith.mulf %1, %1 : vector<8x128xf32>
    %13 = arith.mulf %5, %5 : vector<8x128xf32>
    %14 = arith.addf %12, %13 : vector<8x128xf32>
    %15 = arith.mulf %9, %9 : vector<8x128xf32>
    %16 = arith.addf %14, %15 : vector<8x128xf32>
    %cst = arith.constant 1.000000e-24 : f32
    %17 = vector.broadcast %cst : f32 to vector<8x128xf32>
    %18 = arith.maximumf %16, %17 : vector<8x128xf32>
    %19 = math.rsqrt %18 : vector<8x128xf32>
    %20 = arith.mulf %1, %19 : vector<8x128xf32>
    %21 = arith.mulf %5, %19 : vector<8x128xf32>
    %22 = arith.mulf %9, %19 : vector<8x128xf32>
    %23 = arith.mulf %20, %3 : vector<8x128xf32>
    %24 = arith.mulf %21, %7 : vector<8x128xf32>
    %25 = arith.addf %23, %24 : vector<8x128xf32>
    %26 = arith.mulf %22, %11 : vector<8x128xf32>
    %27 = arith.addf %25, %26 : vector<8x128xf32>
    %28 = arith.mulf %27, %20 : vector<8x128xf32>
    %29 = arith.subf %3, %28 : vector<8x128xf32>
    %30 = arith.mulf %27, %21 : vector<8x128xf32>
    %31 = arith.subf %7, %30 : vector<8x128xf32>
    %32 = arith.mulf %27, %22 : vector<8x128xf32>
    %33 = arith.subf %11, %32 : vector<8x128xf32>
    %34 = arith.mulf %29, %29 : vector<8x128xf32>
    %35 = arith.mulf %31, %31 : vector<8x128xf32>
    %36 = arith.addf %34, %35 : vector<8x128xf32>
    %37 = arith.mulf %33, %33 : vector<8x128xf32>
    %38 = arith.addf %36, %37 : vector<8x128xf32>
    %cst_12 = arith.constant 1.000000e-24 : f32
    %39 = vector.broadcast %cst_12 : f32 to vector<8x128xf32>
    %40 = arith.maximumf %38, %39 : vector<8x128xf32>
    %41 = math.rsqrt %40 : vector<8x128xf32>
    %42 = arith.mulf %29, %41 : vector<8x128xf32>
    %43 = arith.mulf %31, %41 : vector<8x128xf32>
    %44 = arith.mulf %33, %41 : vector<8x128xf32>
    %45 = arith.mulf %21, %44 : vector<8x128xf32>
    %46 = arith.mulf %22, %43 : vector<8x128xf32>
    %47 = arith.subf %45, %46 : vector<8x128xf32>
    %48 = arith.mulf %22, %42 : vector<8x128xf32>
    %49 = arith.mulf %20, %44 : vector<8x128xf32>
    %50 = arith.subf %48, %49 : vector<8x128xf32>
    %51 = arith.mulf %20, %43 : vector<8x128xf32>
    %52 = arith.mulf %21, %42 : vector<8x128xf32>
    %53 = arith.subf %51, %52 : vector<8x128xf32>
    %c0_13 = arith.constant 0 : index
    %c0_14 = arith.constant 0 : index
    %c0_15 = arith.constant 0 : index
    %54 = vector.load %arg2[%c0_13, %c0_14, %c0_15] : memref<9x8x128xf32, #tpu.memory_space<vmem>>, vector<1x8x128xf32>
    %55 = vector.shape_cast %54 : vector<1x8x128xf32> to vector<8x128xf32>
    %56 = vector.shape_cast %20 : vector<8x128xf32> to vector<1x8x128xf32>
    tpu.vector_store %arg2[%c0_13, %c0_14, %c0_15], %56 {strides = array<i32>} : memref<9x8x128xf32, #tpu.memory_space<vmem>>, vector<1x8x128xf32>,
    %c1_16 = arith.constant 1 : index
    %c0_17 = arith.constant 0 : index
    %c0_18 = arith.constant 0 : index
    %57 = vector.load %arg2[%c1_16, %c0_17, %c0_18] : memref<9x8x128xf32, #tpu.memory_space<vmem>>, vector<1x8x128xf32>
    %58 = vector.shape_cast %57 : vector<1x8x128xf32> to vector<8x128xf32>
    %59 = vector.shape_cast %42 : vector<8x128xf32> to vector<1x8x128xf32>
    tpu.vector_store %arg2[%c1_16, %c0_17, %c0_18], %59 {strides = array<i32>} : memref<9x8x128xf32, #tpu.memory_space<vmem>>, vector<1x8x128xf32>,
    %c2_19 = arith.constant 2 : index
    %c0_20 = arith.constant 0 : index
    %c0_21 = arith.constant 0 : index
    %60 = vector.load %arg2[%c2_19, %c0_20, %c0_21] : memref<9x8x128xf32, #tpu.memory_space<vmem>>, vector<1x8x128xf32>
    %61 = vector.shape_cast %60 : vector<1x8x128xf32> to vector<8x128xf32>
    %62 = vector.shape_cast %47 : vector<8x128xf32> to vector<1x8x128xf32>
    tpu.vector_store %arg2[%c2_19, %c0_20, %c0_21], %62 {strides = array<i32>} : memref<9x8x128xf32, #tpu.memory_space<vmem>>, vector<1x8x128xf32>,
    %c3_22 = arith.constant 3 : index
    %c0_23 = arith.constant 0 : index
    %c0_24 = arith.constant 0 : index
    %63 = vector.load %arg2[%c3_22, %c0_23, %c0_24] : memref<9x8x128xf32, #tpu.memory_space<vmem>>, vector<1x8x128xf32>
    %64 = vector.shape_cast %63 : vector<1x8x128xf32> to vector<8x128xf32>
    %65 = vector.shape_cast %21 : vector<8x128xf32> to vector<1x8x128xf32>
    tpu.vector_store %arg2[%c3_22, %c0_23, %c0_24], %65 {strides = array<i32>} : memref<9x8x128xf32, #tpu.memory_space<vmem>>, vector<1x8x128xf32>,
    %c4_25 = arith.constant 4 : index
    %c0_26 = arith.constant 0 : index
    %c0_27 = arith.constant 0 : index
    %66 = vector.load %arg2[%c4_25, %c0_26, %c0_27] : memref<9x8x128xf32, #tpu.memory_space<vmem>>, vector<1x8x128xf32>
    %67 = vector.shape_cast %66 : vector<1x8x128xf32> to vector<8x128xf32>
    %68 = vector.shape_cast %43 : vector<8x128xf32> to vector<1x8x128xf32>
    tpu.vector_store %arg2[%c4_25, %c0_26, %c0_27], %68 {strides = array<i32>} : memref<9x8x128xf32, #tpu.memory_space<vmem>>, vector<1x8x128xf32>,
    %c5_28 = arith.constant 5 : index
    %c0_29 = arith.constant 0 : index
    %c0_30 = arith.constant 0 : index
    %69 = vector.load %arg2[%c5_28, %c0_29, %c0_30] : memref<9x8x128xf32, #tpu.memory_space<vmem>>, vector<1x8x128xf32>
    %70 = vector.shape_cast %69 : vector<1x8x128xf32> to vector<8x128xf32>
    %71 = vector.shape_cast %50 : vector<8x128xf32> to vector<1x8x128xf32>
    tpu.vector_store %arg2[%c5_28, %c0_29, %c0_30], %71 {strides = array<i32>} : memref<9x8x128xf32, #tpu.memory_space<vmem>>, vector<1x8x128xf32>,
    %c6 = arith.constant 6 : index
    %c0_31 = arith.constant 0 : index
    %c0_32 = arith.constant 0 : index
    %72 = vector.load %arg2[%c6, %c0_31, %c0_32] : memref<9x8x128xf32, #tpu.memory_space<vmem>>, vector<1x8x128xf32>
    %73 = vector.shape_cast %72 : vector<1x8x128xf32> to vector<8x128xf32>
    %74 = vector.shape_cast %22 : vector<8x128xf32> to vector<1x8x128xf32>
    tpu.vector_store %arg2[%c6, %c0_31, %c0_32], %74 {strides = array<i32>} : memref<9x8x128xf32, #tpu.memory_space<vmem>>, vector<1x8x128xf32>,
    %c7 = arith.constant 7 : index
    %c0_33 = arith.constant 0 : index
    %c0_34 = arith.constant 0 : index
    %75 = vector.load %arg2[%c7, %c0_33, %c0_34] : memref<9x8x128xf32, #tpu.memory_space<vmem>>, vector<1x8x128xf32>
    %76 = vector.shape_cast %75 : vector<1x8x128xf32> to vector<8x128xf32>
    %77 = vector.shape_cast %44 : vector<8x128xf32> to vector<1x8x128xf32>
    tpu.vector_store %arg2[%c7, %c0_33, %c0_34], %77 {strides = array<i32>} : memref<9x8x128xf32, #tpu.memory_space<vmem>>, vector<1x8x128xf32>,
    %c8 = arith.constant 8 : index
    %c0_35 = arith.constant 0 : index
    %c0_36 = arith.constant 0 : index
    %78 = vector.load %arg2[%c8, %c0_35, %c0_36] : memref<9x8x128xf32, #tpu.memory_space<vmem>>, vector<1x8x128xf32>
    %79 = vector.shape_cast %78 : vector<1x8x128xf32> to vector<8x128xf32>
    %80 = vector.shape_cast %53 : vector<8x128xf32> to vector<1x8x128xf32>
    tpu.vector_store %arg2[%c8, %c0_35, %c0_36], %80 {strides = array<i32>} : memref<9x8x128xf32, #tpu.memory_space<vmem>>, vector<1x8x128xf32>,
    return
  }
  func.func @transform_0(%arg0: i32) -> (i32, i32, i32) {
    %c0_i32 = arith.constant 0 : i32
    %c0_i32_0 = arith.constant 0 : i32
    %c0_i32_1 = arith.constant 0 : i32
    return %c0_i32, %arg0, %c0_i32_0 : i32, i32, i32
  }
  func.func @transform_1(%arg0: i32) -> (i32, i32, i32) {
    %c0_i32 = arith.constant 0 : i32
    %c0_i32_0 = arith.constant 0 : i32
    %c0_i32_1 = arith.constant 0 : i32
    return %c0_i32, %arg0, %c0_i32_0 : i32, i32, i32
  }
}

</mosaic_0001>

<llo_original>
// kernel: tpu_custom_call.1
$region0: #{tpu_custom_call.1}
  #allocation0 [shape = 'u32[]', space=smem, size = 0x4, offset = 0x4, fixed_abs, tag = 'smem constant byte address 0x4 - core index']
  #allocation1 [shape = 'u32[144,128]{1,0:T(1,128)}', space=vmem, size = 0x12000, scoped, tag = 'internal scratch']
  %s0 = inlined_call_operand.hbm [shape: f32[6,8,128], index: 0, kind: input, shape index: {}]
  %s1 = inlined_call_operand.hbm [shape: f32[9,8,128], index: 1, kind: output, shape index: {}]
  %s2 = sld [smem:[#allocation0]]
  $region18: #{tpu_custom_call.1} parent=0
    _
  %s4 = ssub.s32 1, %s2
  %s5 = scalar_select 0, %s4, %s2
  $region1: #{tpu_custom_call.1} parent=0
    #allocation2 [shape = 'u8[24576]{0}', space=vmem, size = 0x6000, scoped, tag = 'input window, operand 0, single buffered']
    #allocation3 [shape = 's32[1]{0}', space=sflag, size = 0x4, scoped, tag = 'scoped memory for tpu_custom_call.1']
    #allocation4 [shape = 's32[1]{0}', space=sflag, size = 0x4, scoped, tag = 'scoped memory for tpu_custom_call.1']
    #allocation5 [shape = 'u8[36864]{0}', space=vmem, size = 0x9000, scoped, tag = 'output window, operand 0, single buffered']
    %6 = vsyncpa [#allocation3], 0
    %7 = vsyncpa [#allocation4], 0
    // Predicated region
    $region2: #{tpu_custom_call.1} parent=1 // pred_check
      _
    $region3: #{tpu_custom_call.1} parent=1 // pred_check_branch
      %9 = sbr.rel (0) target = $region5
    $region4: #{tpu_custom_call.1} parent=1 // pred_region
      %s11 = ssub.s32 768, 768
      %12 = vsyncadd [#allocation3], %s11
      %s13 = sshll.u32 [#allocation2], 4
      %s14 = int_to_ptr.vmem [resolvable:$true] %s13
      %19 = dma.hbm_to_vmem [thread:$0]  %s0, 768, %s14, [#allocation3], 128, 128, 8
    $region5: #{tpu_custom_call.1} parent=1 // pred_fallthru
      _
    // Predicated region
    $region6: #{tpu_custom_call.1} parent=1 // pred_check
      _
    $region7: #{tpu_custom_call.1} parent=1 // pred_check_branch
      %21 = sbr.rel (0) target = $region9
    $region8: #{tpu_custom_call.1} parent=1 // pred_region
      %22 = dma.done [#allocation3], 768
    $region9: #{tpu_custom_call.1} parent=1 // pred_fallthru
      _
    %v23 = vld [vmem:[#allocation2] sm:$0xff]
    %s24 = scalar_lea.vmem [#allocation2], 8
    %v25 = vld [vmem:[%s24] sm:$0xff]
    %s26 = scalar_lea.vmem [#allocation2], 16
    %v27 = vld [vmem:[%s26] sm:$0xff]
    %s28 = scalar_lea.vmem [#allocation2], 24
    %v29 = vld [vmem:[%s28] sm:$0xff]
    %s30 = scalar_lea.vmem [#allocation2], 32
    %v31 = vld [vmem:[%s30] sm:$0xff]
    %s32 = scalar_lea.vmem [#allocation2], 40
    %v33 = vld [vmem:[%s32] sm:$0xff]
    %v34 = vmul.f32 %v23, %v23
    %v35 = vmul.f32 %v27, %v27
    %v36 = vadd.f32 %v34, %v35
    %v37 = vmul.f32 %v31, %v31
    %v38 = vadd.f32 %v36, %v37
    %v39 = vmax.f32 %v38, 1e-24
    %v40 = vrsqrt.pop %v39
    %v41 = vmul.f32 %v23, %v40
    %v42 = vmul.f32 %v27, %v40
    %v43 = vmul.f32 %v31, %v40
    %v44 = vmul.f32 %v41, %v25
    %v45 = vmul.f32 %v42, %v29
    %v46 = vadd.f32 %v44, %v45
    %v47 = vmul.f32 %v43, %v33
    %v48 = vadd.f32 %v46, %v47
    %v49 = vmul.f32 %v48, %v41
    %v50 = vsub.f32 %v25, %v49
    %v51 = vmul.f32 %v48, %v42
    %v52 = vsub.f32 %v29, %v51
    %v53 = vmul.f32 %v48, %v43
    %v54 = vsub.f32 %v33, %v53
    %v55 = vmul.f32 %v50, %v50
    %v56 = vmul.f32 %v52, %v52
    %v57 = vadd.f32 %v55, %v56
    %v58 = vmul.f32 %v54, %v54
    %v59 = vadd.f32 %v57, %v58
    %v60 = vmax.f32 %v59, 1e-24
    %v61 = vrsqrt.pop %v60
    %v62 = vmul.f32 %v50, %v61
    %v63 = vmul.f32 %v52, %v61
    %v64 = vmul.f32 %v54, %v61
    %v65 = vmul.f32 %v42, %v64
    %v66 = vmul.f32 %v43, %v63
    %v67 = vsub.f32 %v65, %v66
    %v68 = vmul.f32 %v43, %v62
    %v69 = vmul.f32 %v41, %v64
    %v70 = vsub.f32 %v68, %v69
    %v71 = vmul.f32 %v41, %v63
    %v72 = vmul.f32 %v42, %v62
    %v73 = vsub.f32 %v71, %v72
    %74 = vst [vmem:[#allocation5] sm:$0xff] %v41
    %s75 = scalar_lea.vmem [#allocation5], 8
    %76 = vst [vmem:[%s75] sm:$0xff] %v62
    %s77 = scalar_lea.vmem [#allocation5], 16
    %78 = vst [vmem:[%s77] sm:$0xff] %v67
    %s79 = scalar_lea.vmem [#allocation5], 24
    %80 = vst [vmem:[%s79] sm:$0xff] %v42
    %s81 = scalar_lea.vmem [#allocation5], 32
    %82 = vst [vmem:[%s81] sm:$0xff] %v63
    %s83 = scalar_lea.vmem [#allocation5], 40
    %84 = vst [vmem:[%s83] sm:$0xff] %v70
    %s85 = scalar_lea.vmem [#allocation5], 48
    %86 = vst [vmem:[%s85] sm:$0xff] %v43
    %s87 = scalar_lea.vmem [#allocation5], 56
    %88 = vst [vmem:[%s87] sm:$0xff] %v64
    %s89 = scalar_lea.vmem [#allocation5], 64
    %90 = vst [vmem:[%s89] sm:$0xff] %v73
    // Predicated region
    $region10: #{tpu_custom_call.1} parent=1 // pred_check
      _
    $region11: #{tpu_custom_call.1} parent=1 // pred_check_branch
      %92 = sbr.rel (0) target = $region13
    $region12: #{tpu_custom_call.1} parent=1 // pred_region
      %s94 = ssub.s32 1152, 1152
      %95 = vsyncadd [#allocation4], %s94
      %s96 = sshll.u32 [#allocation5], 4
      %s97 = int_to_ptr.vmem [resolvable:$true] %s96
      %102 = dma.vmem_to_hbm [thread:$0]  %s97, 1152, %s1, [#allocation4], 128, 128, 8
    $region13: #{tpu_custom_call.1} parent=1 // pred_fallthru
      _
    // Predicated region
    $region14: #{tpu_custom_call.1} parent=1 // pred_check
      _
    $region15: #{tpu_custom_call.1} parent=1 // pred_check_branch
      %104 = sbr.rel (0) target = $region17
    $region16: #{tpu_custom_call.1} parent=1 // pred_region
      %105 = dma.done [#allocation4], 1152
    $region17: #{tpu_custom_call.1} parent=1 // pred_fallthru
      _
    %106 = vsyncpa [#allocation3], 1
    %107 = vsyncpa [#allocation4], 1

</llo_original>
